<compile_context>
chip_gen: v7x
topology: tpu7x:2x2x1
jax: 0.10.0
libtpu: 0.0.40
codegen_flags: <defaults>
</compile_context>

<pallas_src>
import jax
import jax.numpy as jnp
from jax.experimental import pallas as pl
from jax.experimental.pallas import tpu as pltpu


def _row_sum_kernel(x_ref, sum_ref):
    # x_ref: (r_tile, s_tile) tile; sum_ref: (r_tile, 1) resident accumulator.
    @pl.when(pl.program_id(1) == 0)
    def _():
        sum_ref[...] = jnp.zeros_like(sum_ref)

    sum_ref[...] += jnp.sum(x_ref[...].astype(jnp.float32), axis=-1,
                            keepdims=True)


def _scale_kernel(x_ref, g_ref, o_ref):
    # x_ref: (r_tile, s_tile); g_ref: (r_tile, 1) per-row gate; o_ref same as x.
    o_ref[...] = (x_ref[...].astype(jnp.float32) * g_ref[...]).astype(o_ref.dtype)


def _round_up(n, m):
    return ((n + m - 1) // m) * m


def channel_se_layer_3d(x, w1, b1, w2, b2, *,
                        s_tile_max=2048,
                        tile_bytes_target=2 * 1024 * 1024):
    """x: (B, C, D, H, W). w1: (C, Cr), b1: (Cr,), w2: (Cr, C), b2: (C,)."""
    B, C, D, H, W = x.shape
    S = D * H * W
    rows = B * C

    # ---- tile selection (lane dim multiple of 128, sublane dim multiple of 8)
    s_tile = min(s_tile_max, _round_up(S, 128))
    S_pad = _round_up(S, s_tile)
    r_full = _round_up(rows, 8)
    max_r = max(8, (tile_bytes_target // (s_tile * 4)) // 8 * 8)
    r_tile = min(r_full, max_r)
    R_pad = _round_up(rows, r_tile)
    grid_r = R_pad // r_tile
    grid_s = S_pad // s_tile

    x_flat = x.reshape(rows, S)
    if R_pad != rows or S_pad != S:
        x_flat = jnp.pad(x_flat, ((0, R_pad - rows), (0, S_pad - S)))

    vmem_limit = 32 * 1024 * 1024

    # ---- kernel 1: per-(B,C) spatial sums -----------------------------------
    row_sums = pl.pallas_call(
        _row_sum_kernel,
        out_shape=jax.ShapeDtypeStruct((R_pad, 1), jnp.float32),
        grid_spec=pltpu.PrefetchScalarGridSpec(
            num_scalar_prefetch=0,
            grid=(grid_r, grid_s),
            in_specs=[pl.BlockSpec((r_tile, s_tile), lambda r, s: (r, s))],
            out_specs=pl.BlockSpec((r_tile, 1), lambda r, s: (r, 0)),
        ),
        compiler_params=pltpu.CompilerParams(
            dimension_semantics=("parallel", "arbitrary"),
            vmem_limit_bytes=vmem_limit),
    )(x_flat)

    # ---- excitation: tiny FCs batched over B in plain JAX (off the MXU-per-
    # grid-step critical path).  mean = sum * static reciprocal of S.
    squeeze = row_sums[:rows, 0].reshape(B, C) * jnp.float32(1.0 / S)
    h = jnp.maximum(
        jnp.dot(squeeze, w1, preferred_element_type=jnp.float32) + b1, 0.0)
    gate = jax.nn.sigmoid(
        jnp.dot(h, w2, preferred_element_type=jnp.float32) + b2)      # (B, C)
    gate_rows = gate.reshape(rows, 1).astype(jnp.float32)
    if R_pad != rows:
        gate_rows = jnp.pad(gate_rows, ((0, R_pad - rows), (0, 0)))

    # ---- kernel 2: channel-wise rescale --------------------------------------
    out_flat = pl.pallas_call(
        _scale_kernel,
        out_shape=jax.ShapeDtypeStruct((R_pad, S_pad), x.dtype),
        grid_spec=pltpu.PrefetchScalarGridSpec(
            num_scalar_prefetch=0,
            grid=(grid_r, grid_s),
            in_specs=[pl.BlockSpec((r_tile, s_tile), lambda r, s: (r, s)),
                      pl.BlockSpec((r_tile, 1), lambda r, s: (r, 0))],
            out_specs=pl.BlockSpec((r_tile, s_tile), lambda r, s: (r, s)),
        ),
        compiler_params=pltpu.CompilerParams(
            dimension_semantics=("parallel", "parallel"),
            vmem_limit_bytes=vmem_limit),
    )(x_flat, gate_rows)

    return out_flat[:rows, :S].reshape(B, C, D, H, W)


def _reference(x, w1, b1, w2, b2):
    """Pure-JAX reference mirroring the PyTorch forward."""
    B, C = x.shape[0], x.shape[1]
    squeeze = jnp.mean(x, axis=(2, 3, 4))                     # (B, C)
    h = jax.nn.relu(squeeze @ w1 + b1)                        # (B, Cr)
    g = jax.nn.sigmoid(h @ w2 + b2)                           # (B, C)
    return x * g.reshape(B, C, 1, 1, 1)


if __name__ == "__main__":
    # Module config: in_channels=4, reduction_ratio=2 -> reduced=2
    B, C, D, H, W = 2, 4, 8, 8, 8
    Cr = C // 2

    key = jax.random.PRNGKey(0)
    kx, k1, k2, k3, k4 = jax.random.split(key, 5)

    x = jax.random.normal(kx, (B, C, D, H, W), dtype=jnp.float32)

    # Deterministic init mimicking nn.Linear (uniform +/- 1/sqrt(fan_in)).
    # Weights stored transposed relative to PyTorch so we compute (B,C)@(C,Cr).
    bound1 = 1.0 / jnp.sqrt(C)
    w1 = jax.random.uniform(k1, (C, Cr), jnp.float32, -bound1, bound1)
    b1 = jax.random.uniform(k2, (Cr,), jnp.float32, -bound1, bound1)
    bound2 = 1.0 / jnp.sqrt(Cr)
    w2 = jax.random.uniform(k3, (Cr, C), jnp.float32, -bound2, bound2)
    b2 = jax.random.uniform(k4, (C,), jnp.float32, -bound2, bound2)

    out = channel_se_layer_3d(x, w1, b1, w2, b2)
    out = jax.block_until_ready(out)

    ref = _reference(x, w1, b1, w2, b2)
    assert out.shape == (B, C, D, H, W)
    assert jnp.allclose(out, ref, atol=1e-5, rtol=1e-5)

    print("KERNEL_OK")
</pallas_src>

<mosaic_0001>
module attributes {stable_mosaic.version = 11 : i64} {
  func.func @_row_sum_kernel(%arg0: i32, %arg1: i32, %arg2: memref<8x512xf32, #tpu.memory_space<vmem>>, %arg3: memref<8x1xf32, #tpu.memory_space<vmem>>) attributes {dimension_semantics = [#tpu.dimension_semantics<parallel>, #tpu.dimension_semantics<arbitrary>], iteration_bounds = array<i64: 1, 1>, scalar_prefetch = 0 : i64, scratch_operands = 0 : i64, tpu.core_type = #tpu.core_type<tc>, window_params = [{transform_indices = @transform_0, window_bounds = array<i64: 8, 512>}, {transform_indices = @transform_1, window_bounds = array<i64: 8, 1>}]} {
    %c0_i32 = arith.constant 0 : i32
    %0 = arith.cmpi eq, %arg1, %c0_i32 : i32
    %1 = arith.extui %0 : i1 to i32
    %c0_i32_0 = arith.constant 0 : i32
    %2 = arith.cmpi ne, %1, %c0_i32_0 : i32
    scf.if %2 {
      %cst_6 = arith.constant 0.000000e+00 : f32
      %9 = vector.broadcast %cst_6 : f32 to vector<8x1xf32>
      %c0_7 = arith.constant 0 : index
      %c0_8 = arith.constant 0 : index
      %10 = vector.load %arg3[%c0_7, %c0_8] : memref<8x1xf32, #tpu.memory_space<vmem>>, vector<8x1xf32>
      tpu.vector_store %arg3[%c0_7, %c0_8], %9 {strides = array<i32>} : memref<8x1xf32, #tpu.memory_space<vmem>>, vector<8x1xf32>,
    } else {
    }
    %c0 = arith.constant 0 : index
    %c0_1 = arith.constant 0 : index
    %3 = vector.load %arg3[%c0, %c0_1] : memref<8x1xf32, #tpu.memory_space<vmem>>, vector<8x1xf32>
    %c0_2 = arith.constant 0 : index
    %c0_3 = arith.constant 0 : index
    %4 = vector.load %arg2[%c0_2, %c0_3] : memref<8x512xf32, #tpu.memory_space<vmem>>, vector<8x512xf32>
    %cst = arith.constant dense<0.000000e+00> : vector<8xf32>
    %5 = vector.multi_reduction <add>, %4, %cst [1] : vector<8x512xf32> to vector<8xf32>
    %6 = vector.shape_cast %5 : vector<8xf32> to vector<8x1xf32>
    %7 = arith.addf %3, %6 : vector<8x1xf32>
    %c0_4 = arith.constant 0 : index
    %c0_5 = arith.constant 0 : index
    %8 = vector.load %arg3[%c0_4, %c0_5] : memref<8x1xf32, #tpu.memory_space<vmem>>, vector<8x1xf32>
    tpu.vector_store %arg3[%c0_4, %c0_5], %7 {strides = array<i32>} : memref<8x1xf32, #tpu.memory_space<vmem>>, vector<8x1xf32>,
    return
  }
  func.func @transform_0(%arg0: i32, %arg1: i32) -> (i32, i32) {
    %c0_i32 = arith.constant 0 : i32
    return %arg0, %arg1 : i32, i32
  }
  func.func @transform_1(%arg0: i32, %arg1: i32) -> (i32, i32) {
    %c0_i32 = arith.constant 0 : i32
    %c0_i32_0 = arith.constant 0 : i32
    return %arg0, %c0_i32 : i32, i32
  }
}

</mosaic_0001>

<llo_original>
// kernel: tpu_custom_call.1
$region0: #{tpu_custom_call.1}
  #allocation0 [shape = 'u32[]', space=smem, size = 0x4, offset = 0x4, fixed_abs, tag = 'smem constant byte address 0x4 - core index']
  #allocation1 [shape = 'u32[144,128]{1,0:T(1,128)}', space=vmem, size = 0x12000, scoped, tag = 'internal scratch']
  %s0 = inlined_call_operand.hbm [shape: f32[8,512], index: 0, kind: input, shape index: {}]
  %s1 = inlined_call_operand.vmem [shape: f32[8,1], index: 1, kind: output, shape index: {}]
  %s2 = sld [smem:[#allocation0]]
  $region22: #{tpu_custom_call.1} parent=0
    _
  %s4 = ssub.s32 1, %s2
  %s5 = scalar_select 0, %s4, %s2
  $region1: #{tpu_custom_call.1} parent=0
    #allocation2 [shape = 'u8[16384]{0}', space=vmem, size = 0x4000, scoped, tag = 'input window, operand 0, single buffered']
    #allocation3 [shape = 's32[1]{0}', space=sflag, size = 0x4, scoped, tag = 'scoped memory for tpu_custom_call.1']
    %6 = vsyncpa [#allocation3], 0
    // Predicated region
    $region2: #{tpu_custom_call.1} parent=1 // pred_check
      _
    $region3: #{tpu_custom_call.1} parent=1 // pred_check_branch
      %8 = sbr.rel (0) target = $region5
    $region4: #{tpu_custom_call.1} parent=1 // pred_region
      %s10 = ssub.s32 512, 512
      %11 = vsyncadd [#allocation3], %s10
      %s13 = sshll.u32 [#allocation2], 4
      %s14 = int_to_ptr.vmem [resolvable:$true] %s13
      %16 = dma.hbm_to_vmem [thread:$0]  %s0, 512, %s14, [#allocation3]
    $region5: #{tpu_custom_call.1} parent=1 // pred_fallthru
      _
    // Predicated region
    $region6: #{tpu_custom_call.1} parent=1 // pred_check
      _
    $region7: #{tpu_custom_call.1} parent=1 // pred_check_branch
      %18 = sbr.rel (0) target = $region9
    $region8: #{tpu_custom_call.1} parent=1 // pred_region
      %19 = dma.done [#allocation3], 512
    $region9: #{tpu_custom_call.1} parent=1 // pred_fallthru
      _
    %p20 = scmp.eq.s32.totalorder 0, 0
    // Predicated region
    $region10: #{tpu_custom_call.1} parent=1 // pred_check
      %p21 = pneg %p20
    $region11: #{tpu_custom_call.1} parent=1 // pred_check_branch
      %23 = sbr.rel (%p21) target = $region13
    $region12: #{tpu_custom_call.1} parent=1 // pred_region
      %vm24 = vcmask 7168
      %25 = vst.msk [vmem:[%s1] sm:$0xff] %vm24, 0.0
    $region13: #{tpu_custom_call.1} parent=1 // pred_fallthru
      _
    %v26 = vld [vmem:[%s1] sm:$0xff]
    %v27 = vld [vmem:[#allocation2] sm:$0xff]
    %v28 = vld [vmem:[#allocation2 + $0x8] sm:$0xff]
    %v29 = vld [vmem:[#allocation2 + $0x10] sm:$0xff]
    %v30 = vld [vmem:[#allocation2 + $0x18] sm:$0xff]
    %v31 = vadd.f32 %v27, %v28
    %v32 = vadd.f32 %v31, %v29
    %v33 = vadd.f32 %v32, %v30
    %34 = vadd.xlane.f32.xlu0 %v33
    %v35 = vpop.xlane.xlu0 %34
    %v36 = vadd.f32 %v26, %v35
    %vm37 = vcmask 7168
    %38 = vst.msk [vmem:[%s1] sm:$0xff] %vm37, %v36
    // Predicated region
    $region14: #{tpu_custom_call.1} parent=1 // pred_check
      _
    $region15: #{tpu_custom_call.1} parent=1 // pred_check_branch
      %40 = sbr.rel (0) target = $region17
    $region16: #{tpu_custom_call.1} parent=1 // pred_region
      _
    $region17: #{tpu_custom_call.1} parent=1 // pred_fallthru
      _
    // Predicated region
    $region18: #{tpu_custom_call.1} parent=1 // pred_check
      _
    $region19: #{tpu_custom_call.1} parent=1 // pred_check_branch
      %42 = sbr.rel (0) target = $region21
    $region20: #{tpu_custom_call.1} parent=1 // pred_region
      _
    $region21: #{tpu_custom_call.1} parent=1 // pred_fallthru
      _
    %43 = vsyncpa [#allocation3], 1

</llo_original>
